<compile_context>
chip_gen: v7x
topology: tpu7x:2x2x1
jax: 0.10.0
libtpu: 0.0.40
codegen_flags: <defaults>
</compile_context>

<pallas_src>
import functools
import numpy as np
import jax
import jax.numpy as jnp
from jax import lax
from jax.experimental import pallas as pl
from jax.experimental.pallas import tpu as pltpu


# ----------------------------- fused Pallas kernel -----------------------------

def _stem_fused_kernel(p_ref, pm_ref, wc_ref, bc_ref, w4_ref, b4_ref,
                       w5a_ref, w5b_ref, b5_ref, o_ref, *, cin, c123, cdtype):
    patches = p_ref[...]                                               # (TM, 25*cin)

    # Merged matmul.  Columns = [branches 1-3 (+ their downsample residual, folded) |
    # downsample columns for branch 4].  BN scale already folded into wc.
    acc = jnp.dot(patches, wc_ref[...], preferred_element_type=jnp.float32)
    acc = acc + bc_ref[...]                                            # (TM, c123+p3) f32

    h_a = jnp.maximum(acc[:, :c123], 0.0)                              # branches 1-3, ReLU

    # MaxPool2d(3, stride, pad=1): the 9 taps are the centre 3x3 of the 5x5 im2col.
    # pm holds an additive 0 / -3e38 per-tap mask restoring -inf padding at borders.
    pm = pm_ref[...]                                                   # (TM, 9)
    pooled = None
    t = 0
    for ky in range(3):
        for kx in range(3):
            tap = (ky + 1) * 5 + (kx + 1)
            v = patches[:, tap * cin:(tap + 1) * cin] + pm[:, t:t + 1]
            pooled = v if pooled is None else jnp.maximum(pooled, v)
            t += 1

    # conv4 (1x1) + bn4
    out4 = jnp.dot(pooled, w4_ref[...],
                   preferred_element_type=jnp.float32) + b4_ref[...]   # (TM, p3)

    # branch 4 + its downsample residual, ReLU
    h_b = jnp.maximum(out4 + acc[:, c123:], 0.0)

    # conv5 (1x1) + bn5 + ReLU, split per column group so no lane concatenate is needed.
    out = (jnp.dot(h_a.astype(cdtype), w5a_ref[...], preferred_element_type=jnp.float32)
           + jnp.dot(h_b.astype(cdtype), w5b_ref[...], preferred_element_type=jnp.float32)
           + b5_ref[...])
    o_ref[...] = jnp.maximum(out, 0.0).astype(o_ref.dtype)


# ----------------------------- trace-time helpers -----------------------------

def _round_up(a, b):
    return (a + b - 1) // b * b


def _cdiv(a, b):
    return -(-a // b)


def _fold_bn(bnp, eps=1e-5):
    g, b, m, v = bnp
    s = g / jnp.sqrt(v + eps)
    return s, b - m * s


def _embed_5x5(w, pad):
    # (O, I, k, k) -> (O, I, 5, 5), zero-padded spatially so tap positions line up with
    # the single 5x5 / pad=2 / stride-2 im2col of the input.
    return jnp.pad(w, ((0, 0), (0, 0), (pad, pad), (pad, pad)))


def _as_mat(w5):
    # (O, I, 5, 5) -> (25*I, O), row ordering (ky, kx, i) — matches patch column order.
    o = w5.shape[0]
    return jnp.transpose(w5, (2, 3, 1, 0)).reshape(-1, o)


# ----------------------------- forward pass -----------------------------

def stem_block2_forward(x_nchw, params, stride=2, block_m=None,
                        compute_dtype=jnp.bfloat16, out_dtype=None):
    if out_dtype is None:
        out_dtype = compute_dtype
    x = jnp.transpose(x_nchw, (0, 2, 3, 1)).astype(jnp.float32)        # NHWC
    N, H, W, Cin = x.shape
    Ho = (H + 2 - 3) // stride + 1
    Wo = (W + 2 - 3) // stride + 1
    M = N * Ho * Wo

    # ---- fold 1x1 reductions into the spatial convs; fold BN scale into weights ----
    w1 = params['conv1']                                               # (p0, Cin, 1, 1)
    w21 = params['conv2_1'][:, :, 0, 0]
    w31 = params['conv3_1'][:, :, 0, 0]
    w2_eff = jnp.einsum('ockl,ci->oikl', params['conv2_2'], w21,
                        precision=lax.Precision.HIGHEST)               # (p1, Cin, 3, 3)
    w3_eff = jnp.einsum('ockl,ci->oikl', params['conv3_2'], w31,
                        precision=lax.Precision.HIGHEST)               # (p2, Cin, 5, 5)
    w4 = params['conv4'][:, :, 0, 0]                                   # (p3, Cin)
    wds = params['conv_ds']                                            # (Csum, Cin, 1, 1)
    w5 = params['conv5'][:, :, 0, 0]                                   # (64, Csum)

    s1, b1 = _fold_bn(params['bn1']);   s2, b2 = _fold_bn(params['bn2'])
    s3, b3 = _fold_bn(params['bn3']);   s4, b4 = _fold_bn(params['bn4'])
    sds, bds = _fold_bn(params['bn_ds']); s5, b5 = _fold_bn(params['bn5'])

    p0, p1, p2, p3 = w1.shape[0], w2_eff.shape[0], w3_eff.shape[0], w4.shape[0]
    c123 = p0 + p1 + p2
    csum = wds.shape[0]
    assert csum == c123 + p3
    nc = c123 + p3

    # Branches 1-3 and the first c123 downsample channels are linear in the SAME 5x5
    # patches -> fold the residual into the weight matrix / bias (all in f32).
    w123 = jnp.concatenate([
        _as_mat(_embed_5x5(w1, 2)) * s1[None, :],
        _as_mat(_embed_5x5(w2_eff, 1)) * s2[None, :],
        _as_mat(w3_eff) * s3[None, :],
    ], axis=1)                                                         # (25*Cin, c123)
    wds_m = _as_mat(_embed_5x5(wds, 2)) * sds[None, :]                 # (25*Cin, csum)
    wc = jnp.concatenate([w123 + wds_m[:, :c123], wds_m[:, c123:]], axis=1)  # (25*Cin, nc)
    b123 = jnp.concatenate([b1, b2, b3])
    bc = jnp.concatenate([b123 + bds[:c123], bds[c123:]])[None, :]     # (1, nc) f32

    w4m = jnp.transpose(w4) * s4[None, :]                              # (Cin, p3)
    b4m = b4[None, :]
    w5m = jnp.transpose(w5) * s5[None, :]                              # (Csum, 64)
    w5a, w5b = w5m[:c123], w5m[c123:]
    b5m = b5[None, :]

    # ---- single 5x5/pad2/stride im2col of the raw input (zero padded) ----
    xz = jnp.pad(x, ((0, 0), (2, 2), (2, 2), (0, 0)))
    conv_taps = [xz[:, ky::stride, kx::stride, :][:, :Ho, :Wo, :]
                 for ky in range(5) for kx in range(5)]
    patches = jnp.stack(conv_taps, axis=3).reshape(M, 25 * Cin)

    # ---- additive (M, 9) border mask: 0 for in-bounds pool taps, -3e38 otherwise ----
    NEG = jnp.float32(-3e38)
    hh = jnp.arange(Ho)
    ww = jnp.arange(Wo)
    cols = []
    for ky in range(3):
        ih = hh * stride - 1 + ky
        row_ok = (ih >= 0) & (ih < H)                                  # (Ho,)
        for kx in range(3):
            iw = ww * stride - 1 + kx
            col_ok = (iw >= 0) & (iw < W)                              # (Wo,)
            ok = row_ok[:, None] & col_ok[None, :]                     # (Ho, Wo)
            cols.append(jnp.where(ok, 0.0, NEG))
    pmask = jnp.broadcast_to(jnp.stack(cols, axis=-1)[None],
                             (N, Ho, Wo, 9)).reshape(M, 9)

    # matmul operands in compute dtype (bf16 by default on all generations); MXU
    # accumulation and the VPU epilogue stay f32.
    patches_c = patches.astype(compute_dtype)
    pmask_c = pmask.astype(compute_dtype)
    wc_c = wc.astype(compute_dtype)
    w4_c = w4m.astype(compute_dtype)
    w5a_c = w5a.astype(compute_dtype)
    w5b_c = w5b.astype(compute_dtype)

    # ---- M tiling: aim for >=8 grid steps (v7x megacore + pipeline overlap) with
    # otherwise-large tiles; multiple of 16 rows for bf16 sublane packing ----
    if block_m is None:
        block_m = min(4096, _round_up(max(_cdiv(M, 8), 16), 16))
    block_m = max(16, _round_up(block_m, 16))
    m_pad = _round_up(M, block_m)
    if m_pad != M:
        patches_c = jnp.pad(patches_c, ((0, m_pad - M), (0, 0)))
        pmask_c = jnp.pad(pmask_c, ((0, m_pad - M), (0, 0)))
    grid = (m_pad // block_m,)

    kernel = functools.partial(_stem_fused_kernel, cin=Cin, c123=c123,
                               cdtype=compute_dtype)

    bytes_accessed = int(
        patches_c.size * patches_c.dtype.itemsize
        + pmask_c.size * pmask_c.dtype.itemsize
        + wc_c.size * wc_c.dtype.itemsize
        + w4_c.size * w4_c.dtype.itemsize
        + w5a_c.size * w5a_c.dtype.itemsize
        + w5b_c.size * w5b_c.dtype.itemsize
        + (bc.size + b4m.size + b5m.size) * 4
        + m_pad * 64 * jnp.dtype(out_dtype).itemsize)
    flops = int(2 * m_pad * (25 * Cin * nc + Cin * p3 + csum * 64))

    out = pl.pallas_call(
        kernel,
        grid=grid,
        out_shape=jax.ShapeDtypeStruct((m_pad, 64), out_dtype),
        in_specs=[
            pl.BlockSpec((block_m, 25 * Cin), lambda i: (i, 0)),       # im2col patches
            pl.BlockSpec((block_m, 9), lambda i: (i, 0)),              # pool border mask
            pl.BlockSpec((25 * Cin, nc), lambda i: (0, 0)),            # merged conv weights
            pl.BlockSpec((1, nc), lambda i: (0, 0)),                   # merged BN bias
            pl.BlockSpec((Cin, p3), lambda i: (0, 0)),                 # conv4 weights
            pl.BlockSpec((1, p3), lambda i: (0, 0)),                   # bn4 bias
            pl.BlockSpec((c123, 64), lambda i: (0, 0)),                # conv5 (branches 1-3)
            pl.BlockSpec((p3, 64), lambda i: (0, 0)),                  # conv5 (branch 4)
            pl.BlockSpec((1, 64), lambda i: (0, 0)),                   # bn5 bias
        ],
        out_specs=pl.BlockSpec((block_m, 64), lambda i: (i, 0)),
        compiler_params=pltpu.CompilerParams(
            dimension_semantics=("parallel",)),
        cost_estimate=pl.CostEstimate(flops=flops, transcendentals=0,
                                      bytes_accessed=bytes_accessed),
    )(patches_c, pmask_c, wc_c, bc, w4_c, b4m, w5a_c, w5b_c, b5m)

    out = out[:M].reshape(N, Ho, Wo, 64)
    return jnp.transpose(out, (0, 3, 1, 2))                            # NCHW


# ----------------------------- deterministic parameter init -----------------------------

def init_params(key, inplanes=4, planes=(8, 8, 8, 8), channel_reduction=8):
    ks = list(jax.random.split(key, 40))
    it = iter(ks)

    def conv(o, i, kh, kw):
        return 0.1 * jax.random.normal(next(it), (o, i, kh, kw), jnp.float32)

    def bn(c):
        g = 1.0 + 0.1 * jax.random.normal(next(it), (c,), jnp.float32)
        b = 0.1 * jax.random.normal(next(it), (c,), jnp.float32)
        m = 0.05 * jax.random.normal(next(it), (c,), jnp.float32)
        v = 1.0 + 0.1 * jax.random.uniform(next(it), (c,), jnp.float32)
        return (g, b, m, v)

    p = {}
    p['conv1'] = conv(planes[0], inplanes, 1, 1);               p['bn1'] = bn(planes[0])
    p['conv2_1'] = conv(channel_reduction, inplanes, 1, 1)
    p['conv2_2'] = conv(planes[1], channel_reduction, 3, 3);    p['bn2'] = bn(planes[1])
    p['conv3_1'] = conv(channel_reduction, inplanes, 1, 1)
    p['conv3_2'] = conv(planes[2], channel_reduction, 5, 5);    p['bn3'] = bn(planes[2])
    p['conv4'] = conv(planes[3], inplanes, 1, 1);               p['bn4'] = bn(planes[3])
    p['conv_ds'] = conv(sum(planes), inplanes, 1, 1);           p['bn_ds'] = bn(sum(planes))
    p['conv5'] = conv(64, sum(planes), 1, 1);                   p['bn5'] = bn(64)
    return p


# ----------------------------- pure-JAX reference (NCHW, eval-mode BN) -----------------------------

def reference_forward(x, p, stride=2, eps=1e-5):
    def conv(x_, w, s, pad):
        return lax.conv_general_dilated(x_, w, (s, s), ((pad, pad), (pad, pad)),
                                        dimension_numbers=('NCHW', 'OIHW', 'NCHW'),
                                        precision=lax.Precision.HIGHEST)

    def bn(x_, prm):
        g, b, m, v = prm
        sh = (1, -1, 1, 1)
        return (x_ - m.reshape(sh)) / jnp.sqrt(v + eps).reshape(sh) * g.reshape(sh) + b.reshape(sh)

    out1 = bn(conv(x, p['conv1'], stride, 0), p['bn1'])
    out2 = bn(conv(conv(x, p['conv2_1'], 1, 0), p['conv2_2'], stride, 1), p['bn2'])
    out3 = bn(conv(conv(x, p['conv3_1'], 1, 0), p['conv3_2'], stride, 2), p['bn3'])
    pooled = lax.reduce_window(x, -jnp.inf, lax.max, (1, 1, 3, 3), (1, 1, stride, stride),
                               ((0, 0), (0, 0), (1, 1), (1, 1)))
    out4 = bn(conv(pooled, p['conv4'], 1, 0), p['bn4'])
    out = jnp.concatenate([out1, out2, out3, out4], axis=1)
    out = out + bn(conv(x, p['conv_ds'], stride, 0), p['bn_ds'])
    out = jnp.maximum(out, 0.0)
    out = bn(conv(out, p['conv5'], 1, 0), p['bn5'])
    return jnp.maximum(out, 0.0)


# ----------------------------- main -----------------------------

if __name__ == "__main__":
    key = jax.random.PRNGKey(0)
    kx, kp = jax.random.split(key)

    # small shapes consistent with the module: N=2, inplanes=4, 16x16 spatial
    x = jax.random.normal(kx, (2, 4, 16, 16), jnp.float32)             # NCHW
    params = init_params(kp, inplanes=4, planes=(8, 8, 8, 8), channel_reduction=8)

    ref = reference_forward(x, params)

    # f32 matmul + f32 output path — tight correctness check
    fwd_f32 = jax.jit(functools.partial(stem_block2_forward, stride=2,
                                        compute_dtype=jnp.float32, out_dtype=jnp.float32))
    out_f32 = jax.block_until_ready(fwd_f32(x, params))
    assert out_f32.shape == ref.shape == (2, 64, 8, 8), out_f32.shape
    np.testing.assert_allclose(np.asarray(out_f32), np.asarray(ref), atol=2e-3, rtol=2e-3)

    # default path: bf16 matmul operands + bf16 output (f32 accumulation/epilogue) —
    # the production configuration on v5e/v6e/v7x; looser tolerance
    fwd_bf16 = jax.jit(functools.partial(stem_block2_forward, stride=2))
    out_bf16 = jax.block_until_ready(fwd_bf16(x, params))
    np.testing.assert_allclose(np.asarray(out_bf16.astype(jnp.float32)), np.asarray(ref),
                               atol=5e-2, rtol=5e-2)

    print("KERNEL_OK")
</pallas_src>

<mosaic_0001>
module attributes {stable_mosaic.version = 11 : i64} {
  func.func @_stem_fused_kernel(%arg0: i32, %arg1: memref<16x100xf32, #tpu.memory_space<vmem>>, %arg2: memref<16x9xf32, #tpu.memory_space<vmem>>, %arg3: memref<100x32xf32, #tpu.memory_space<vmem>>, %arg4: memref<1x32xf32, #tpu.memory_space<vmem>>, %arg5: memref<4x8xf32, #tpu.memory_space<vmem>>, %arg6: memref<1x8xf32, #tpu.memory_space<vmem>>, %arg7: memref<24x64xf32, #tpu.memory_space<vmem>>, %arg8: memref<8x64xf32, #tpu.memory_space<vmem>>, %arg9: memref<1x64xf32, #tpu.memory_space<vmem>>, %arg10: memref<16x64xf32, #tpu.memory_space<vmem>>) attributes {dimension_semantics = [#tpu.dimension_semantics<parallel>], iteration_bounds = array<i64: 8>, scalar_prefetch = 0 : i64, scratch_operands = 0 : i64, tpu.core_type = #tpu.core_type<tc>, window_params = [{transform_indices = @transform_0, window_bounds = array<i64: 16, 100>}, {transform_indices = @transform_1, window_bounds = array<i64: 16, 9>}, {pipeline_mode = #tpu.pipeline_mode<synchronous>, transform_indices = @transform_2, window_bounds = array<i64: 100, 32>}, {pipeline_mode = #tpu.pipeline_mode<synchronous>, transform_indices = @transform_3, window_bounds = array<i64: 1, 32>}, {pipeline_mode = #tpu.pipeline_mode<synchronous>, transform_indices = @transform_4, window_bounds = array<i64: 4, 8>}, {pipeline_mode = #tpu.pipeline_mode<synchronous>, transform_indices = @transform_5, window_bounds = array<i64: 1, 8>}, {pipeline_mode = #tpu.pipeline_mode<synchronous>, transform_indices = @transform_6, window_bounds = array<i64: 24, 64>}, {pipeline_mode = #tpu.pipeline_mode<synchronous>, transform_indices = @transform_7, window_bounds = array<i64: 8, 64>}, {pipeline_mode = #tpu.pipeline_mode<synchronous>, transform_indices = @transform_8, window_bounds = array<i64: 1, 64>}, {transform_indices = @transform_9, window_bounds = array<i64: 16, 64>}]} {
    %c0 = arith.constant 0 : index
    %c0_0 = arith.constant 0 : index
    %0 = vector.load %arg1[%c0, %c0_0] : memref<16x100xf32, #tpu.memory_space<vmem>>, vector<16x100xf32>
    %c0_1 = arith.constant 0 : index
    %c0_2 = arith.constant 0 : index
    %1 = vector.load %arg3[%c0_1, %c0_2] : memref<100x32xf32, #tpu.memory_space<vmem>>, vector<100x32xf32>
    %cst = arith.constant dense<0.000000e+00> : vector<16x32xf32>
    %2 = tpu.matmul %0, %1, %cst {dimension_numbers = #tpu.dot_dimension_numbers<[1], [0], [0], [1], [0, 0, 1, 1], [], []>} : vector<16x100xf32>, vector<100x32xf32>, vector<16x32xf32> -> vector<16x32xf32>
    %c0_3 = arith.constant 0 : index
    %c0_4 = arith.constant 0 : index
    %3 = vector.load %arg4[%c0_3, %c0_4] : memref<1x32xf32, #tpu.memory_space<vmem>>, vector<1x32xf32>
    %4 = vector.broadcast %3 : vector<1x32xf32> to vector<16x32xf32>
    %5 = arith.addf %2, %4 : vector<16x32xf32>
    %6 = vector.extract_strided_slice %5 {offsets = [0, 0], sizes = [16, 24], strides = [1, 1]} : vector<16x32xf32> to vector<16x24xf32>
    %cst_5 = arith.constant 0.000000e+00 : f32
    %7 = vector.broadcast %cst_5 : f32 to vector<16x24xf32>
    %8 = arith.maximumf %6, %7 : vector<16x24xf32>
    %c0_6 = arith.constant 0 : index
    %c0_7 = arith.constant 0 : index
    %9 = vector.load %arg2[%c0_6, %c0_7] : memref<16x9xf32, #tpu.memory_space<vmem>>, vector<16x9xf32>
    %10 = vector.extract_strided_slice %0 {offsets = [0, 24], sizes = [16, 4], strides = [1, 1]} : vector<16x100xf32> to vector<16x4xf32>
    %11 = vector.extract_strided_slice %9 {offsets = [0, 0], sizes = [16, 1], strides = [1, 1]} : vector<16x9xf32> to vector<16x1xf32>
    %12 = vector.broadcast %11 : vector<16x1xf32> to vector<16x4xf32>
    %13 = arith.addf %10, %12 : vector<16x4xf32>
    %14 = vector.extract_strided_slice %0 {offsets = [0, 28], sizes = [16, 4], strides = [1, 1]} : vector<16x100xf32> to vector<16x4xf32>
    %15 = vector.extract_strided_slice %9 {offsets = [0, 1], sizes = [16, 1], strides = [1, 1]} : vector<16x9xf32> to vector<16x1xf32>
    %16 = vector.broadcast %15 : vector<16x1xf32> to vector<16x4xf32>
    %17 = arith.addf %14, %16 : vector<16x4xf32>
    %18 = arith.maximumf %13, %17 : vector<16x4xf32>
    %19 = vector.extract_strided_slice %0 {offsets = [0, 32], sizes = [16, 4], strides = [1, 1]} : vector<16x100xf32> to vector<16x4xf32>
    %20 = vector.extract_strided_slice %9 {offsets = [0, 2], sizes = [16, 1], strides = [1, 1]} : vector<16x9xf32> to vector<16x1xf32>
    %21 = vector.broadcast %20 : vector<16x1xf32> to vector<16x4xf32>
    %22 = arith.addf %19, %21 : vector<16x4xf32>
    %23 = arith.maximumf %18, %22 : vector<16x4xf32>
    %24 = vector.extract_strided_slice %0 {offsets = [0, 44], sizes = [16, 4], strides = [1, 1]} : vector<16x100xf32> to vector<16x4xf32>
    %25 = vector.extract_strided_slice %9 {offsets = [0, 3], sizes = [16, 1], strides = [1, 1]} : vector<16x9xf32> to vector<16x1xf32>
    %26 = vector.broadcast %25 : vector<16x1xf32> to vector<16x4xf32>
    %27 = arith.addf %24, %26 : vector<16x4xf32>
    %28 = arith.maximumf %23, %27 : vector<16x4xf32>
    %29 = vector.extract_strided_slice %0 {offsets = [0, 48], sizes = [16, 4], strides = [1, 1]} : vector<16x100xf32> to vector<16x4xf32>
    %30 = vector.extract_strided_slice %9 {offsets = [0, 4], sizes = [16, 1], strides = [1, 1]} : vector<16x9xf32> to vector<16x1xf32>
    %31 = vector.broadcast %30 : vector<16x1xf32> to vector<16x4xf32>
    %32 = arith.addf %29, %31 : vector<16x4xf32>
    %33 = arith.maximumf %28, %32 : vector<16x4xf32>
    %34 = vector.extract_strided_slice %0 {offsets = [0, 52], sizes = [16, 4], strides = [1, 1]} : vector<16x100xf32> to vector<16x4xf32>
    %35 = vector.extract_strided_slice %9 {offsets = [0, 5], sizes = [16, 1], strides = [1, 1]} : vector<16x9xf32> to vector<16x1xf32>
    %36 = vector.broadcast %35 : vector<16x1xf32> to vector<16x4xf32>
    %37 = arith.addf %34, %36 : vector<16x4xf32>
    %38 = arith.maximumf %33, %37 : vector<16x4xf32>
    %39 = vector.extract_strided_slice %0 {offsets = [0, 64], sizes = [16, 4], strides = [1, 1]} : vector<16x100xf32> to vector<16x4xf32>
    %40 = vector.extract_strided_slice %9 {offsets = [0, 6], sizes = [16, 1], strides = [1, 1]} : vector<16x9xf32> to vector<16x1xf32>
    %41 = vector.broadcast %40 : vector<16x1xf32> to vector<16x4xf32>
    %42 = arith.addf %39, %41 : vector<16x4xf32>
    %43 = arith.maximumf %38, %42 : vector<16x4xf32>
    %44 = vector.extract_strided_slice %0 {offsets = [0, 68], sizes = [16, 4], strides = [1, 1]} : vector<16x100xf32> to vector<16x4xf32>
    %45 = vector.extract_strided_slice %9 {offsets = [0, 7], sizes = [16, 1], strides = [1, 1]} : vector<16x9xf32> to vector<16x1xf32>
    %46 = vector.broadcast %45 : vector<16x1xf32> to vector<16x4xf32>
    %47 = arith.addf %44, %46 : vector<16x4xf32>
    %48 = arith.maximumf %43, %47 : vector<16x4xf32>
    %49 = vector.extract_strided_slice %0 {offsets = [0, 72], sizes = [16, 4], strides = [1, 1]} : vector<16x100xf32> to vector<16x4xf32>
    %50 = vector.extract_strided_slice %9 {offsets = [0, 8], sizes = [16, 1], strides = [1, 1]} : vector<16x9xf32> to vector<16x1xf32>
    %51 = vector.broadcast %50 : vector<16x1xf32> to vector<16x4xf32>
    %52 = arith.addf %49, %51 : vector<16x4xf32>
    %53 = arith.maximumf %48, %52 : vector<16x4xf32>
    %c0_8 = arith.constant 0 : index
    %c0_9 = arith.constant 0 : index
    %54 = vector.load %arg5[%c0_8, %c0_9] : memref<4x8xf32, #tpu.memory_space<vmem>>, vector<4x8xf32>
    %cst_10 = arith.constant dense<0.000000e+00> : vector<16x8xf32>
    %55 = tpu.matmul %53, %54, %cst_10 {dimension_numbers = #tpu.dot_dimension_numbers<[1], [0], [0], [1], [0, 0, 1, 1], [], []>} : vector<16x4xf32>, vector<4x8xf32>, vector<16x8xf32> -> vector<16x8xf32>
    %c0_11 = arith.constant 0 : index
    %c0_12 = arith.constant 0 : index
    %56 = vector.load %arg6[%c0_11, %c0_12] : memref<1x8xf32, #tpu.memory_space<vmem>>, vector<1x8xf32>
    %57 = vector.broadcast %56 : vector<1x8xf32> to vector<16x8xf32>
    %58 = arith.addf %55, %57 : vector<16x8xf32>
    %59 = vector.extract_strided_slice %5 {offsets = [0, 24], sizes = [16, 8], strides = [1, 1]} : vector<16x32xf32> to vector<16x8xf32>
    %60 = arith.addf %58, %59 : vector<16x8xf32>
    %cst_13 = arith.constant 0.000000e+00 : f32
    %61 = vector.broadcast %cst_13 : f32 to vector<16x8xf32>
    %62 = arith.maximumf %60, %61 : vector<16x8xf32>
    %c0_14 = arith.constant 0 : index
    %c0_15 = arith.constant 0 : index
    %63 = vector.load %arg7[%c0_14, %c0_15] : memref<24x64xf32, #tpu.memory_space<vmem>>, vector<24x64xf32>
    %cst_16 = arith.constant dense<0.000000e+00> : vector<16x64xf32>
    %64 = tpu.matmul %8, %63, %cst_16 {dimension_numbers = #tpu.dot_dimension_numbers<[1], [0], [0], [1], [0, 0, 1, 1], [], []>} : vector<16x24xf32>, vector<24x64xf32>, vector<16x64xf32> -> vector<16x64xf32>
    %c0_17 = arith.constant 0 : index
    %c0_18 = arith.constant 0 : index
    %65 = vector.load %arg8[%c0_17, %c0_18] : memref<8x64xf32, #tpu.memory_space<vmem>>, vector<8x64xf32>
    %cst_19 = arith.constant dense<0.000000e+00> : vector<16x64xf32>
    %66 = tpu.matmul %62, %65, %cst_19 {dimension_numbers = #tpu.dot_dimension_numbers<[1], [0], [0], [1], [0, 0, 1, 1], [], []>} : vector<16x8xf32>, vector<8x64xf32>, vector<16x64xf32> -> vector<16x64xf32>
    %67 = arith.addf %64, %66 : vector<16x64xf32>
    %c0_20 = arith.constant 0 : index
    %c0_21 = arith.constant 0 : index
    %68 = vector.load %arg9[%c0_20, %c0_21] : memref<1x64xf32, #tpu.memory_space<vmem>>, vector<1x64xf32>
    %69 = vector.broadcast %68 : vector<1x64xf32> to vector<16x64xf32>
    %70 = arith.addf %67, %69 : vector<16x64xf32>
    %cst_22 = arith.constant 0.000000e+00 : f32
    %71 = vector.broadcast %cst_22 : f32 to vector<16x64xf32>
    %72 = arith.maximumf %70, %71 : vector<16x64xf32>
    %c0_23 = arith.constant 0 : index
    %c0_24 = arith.constant 0 : index
    %73 = vector.load %arg10[%c0_23, %c0_24] : memref<16x64xf32, #tpu.memory_space<vmem>>, vector<16x64xf32>
    tpu.vector_store %arg10[%c0_23, %c0_24], %72 {strides = array<i32>} : memref<16x64xf32, #tpu.memory_space<vmem>>, vector<16x64xf32>,
    return
  }
  func.func @transform_0(%arg0: i32) -> (i32, i32) {
    %c0_i32 = arith.constant 0 : i32
    %c0_i32_0 = arith.constant 0 : i32
    return %arg0, %c0_i32 : i32, i32
  }
  func.func @transform_1(%arg0: i32) -> (i32, i32) {
    %c0_i32 = arith.constant 0 : i32
    %c0_i32_0 = arith.constant 0 : i32
    return %arg0, %c0_i32 : i32, i32
  }
  func.func @transform_2(%arg0: i32) -> (i32, i32) {
    %c0_i32 = arith.constant 0 : i32
    %c0_i32_0 = arith.constant 0 : i32
    %c0_i32_1 = arith.constant 0 : i32
    return %c0_i32, %c0_i32_0 : i32, i32
  }
  func.func @transform_3(%arg0: i32) -> (i32, i32) {
    %c0_i32 = arith.constant 0 : i32
    %c0_i32_0 = arith.constant 0 : i32
    %c0_i32_1 = arith.constant 0 : i32
    return %c0_i32, %c0_i32_0 : i32, i32
  }
  func.func @transform_4(%arg0: i32) -> (i32, i32) {
    %c0_i32 = arith.constant 0 : i32
    %c0_i32_0 = arith.constant 0 : i32
    %c0_i32_1 = arith.constant 0 : i32
    return %c0_i32, %c0_i32_0 : i32, i32
  }
  func.func @transform_5(%arg0: i32) -> (i32, i32) {
    %c0_i32 = arith.constant 0 : i32
    %c0_i32_0 = arith.constant 0 : i32
    %c0_i32_1 = arith.constant 0 : i32
    return %c0_i32, %c0_i32_0 : i32, i32
  }
  func.func @transform_6(%arg0: i32) -> (i32, i32) {
    %c0_i32 = arith.constant 0 : i32
    %c0_i32_0 = arith.constant 0 : i32
    %c0_i32_1 = arith.constant 0 : i32
    return %c0_i32, %c0_i32_0 : i32, i32
  }
  func.func @transform_7(%arg0: i32) -> (i32, i32) {
    %c0_i32 = arith.constant 0 : i32
    %c0_i32_0 = arith.constant 0 : i32
    %c0_i32_1 = arith.constant 0 : i32
    return %c0_i32, %c0_i32_0 : i32, i32
  }
  func.func @transform_8(%arg0: i32) -> (i32, i32) {
    %c0_i32 = arith.constant 0 : i32
    %c0_i32_0 = arith.constant 0 : i32
    %c0_i32_1 = arith.constant 0 : i32
    return %c0_i32, %c0_i32_0 : i32, i32
  }
  func.func @transform_9(%arg0: i32) -> (i32, i32) {
    %c0_i32 = arith.constant 0 : i32
    %c0_i32_0 = arith.constant 0 : i32
    return %arg0, %c0_i32 : i32, i32
  }
}

</mosaic_0001>

<llo_original>
// kernel: stem_block2_forward.1
$region0: #{stem_block2_forward.1}
  #allocation0 [shape = 'u32[]', space=smem, size = 0x4, offset = 0x4, fixed_abs, tag = 'smem constant byte address 0x4 - core index']
  #allocation1 [shape = 'u32[144,128]{1,0:T(1,128)}', space=vmem, size = 0x12000, scoped, tag = 'internal scratch']
  %s0 = inlined_call_operand.vmem [shape: f32[128,100], index: 0, kind: input, shape index: {}]
  %s1 = inlined_call_operand.vmem [shape: f32[128,9], index: 1, kind: input, shape index: {}]
  %s2 = inlined_call_operand.vmem [shape: f32[100,32], index: 2, kind: input, shape index: {}]
  %s3 = inlined_call_operand.vmem [shape: f32[1,32], index: 3, kind: input, shape index: {}]
  %s4 = inlined_call_operand.vmem [shape: f32[4,8], index: 4, kind: input, shape index: {}]
  %s5 = inlined_call_operand.vmem [shape: f32[1,8], index: 5, kind: input, shape index: {}]
  %s6 = inlined_call_operand.vmem [shape: f32[24,64], index: 6, kind: input, shape index: {}]
  %s7 = inlined_call_operand.vmem [shape: f32[8,64], index: 7, kind: input, shape index: {}]
  %s8 = inlined_call_operand.vmem [shape: f32[1,64], index: 8, kind: input, shape index: {}]
  %s9 = inlined_call_operand.hbm [shape: f32[128,64], index: 9, kind: output, shape index: {}]
  %s10 = sld [smem:[#allocation0]]
  $region69: #{stem_block2_forward.1} parent=0
    _
  %s12 = ssub.s32 1, %s10
  %s13 = scalar_select 0, %s12, %s10
  $region1: #{stem_block2_forward.1} parent=0
    #allocation2 [shape = 'u8[16384]{0}', space=vmem, size = 0x4000, scoped, tag = 'output window, operand 0']
    #allocation3 [shape = 's32[2]{0}', space=sflag, size = 0x8, scoped, tag = 'scoped memory for stem_block2_forward.1']
    %14 = vsyncpa [#allocation3], 0
    %s15 = scalar_lea.sflag [#allocation3], 1
    %16 = vsyncpa %s15, 0
    loop: start=0, step=1, limit=10
    $region2: #{stem_block2_forward.1} parent=1 // loop_pre_header
      _
    $region3: #{stem_block2_forward.1} parent=1 // loop_header
      %s18 = sphi 0, %s22
      %p19 = scmp.ge.s32.totalorder %s18, 10
      %s28 = sphi 0, %s30
      %s31 = sphi 0, %s28
      %s32 = sphi 0, %s31
      %s48 = sphi 0, %s32
      %s54 = sphi 0, %s56
      %s57 = sphi 0, %s54
      %s58 = sphi 0, %s57
      %s74 = sphi 0, %s58
      %s78 = sphi 0, %s78
      %s80 = sphi 0, %s78
      %s81 = sphi 0, %s80
      %s95 = sphi 0, %s81
      %s99 = sphi 0, %s99
      %s101 = sphi 0, %s99
      %s102 = sphi 0, %s101
      %s116 = sphi 0, %s102
      %s120 = sphi 0, %s120
      %s122 = sphi 0, %s120
      %s123 = sphi 0, %s122
      %s137 = sphi 0, %s123
      %s141 = sphi 0, %s141
      %s143 = sphi 0, %s141
      %s144 = sphi 0, %s143
      %s158 = sphi 0, %s144
      %s162 = sphi 0, %s162
      %s164 = sphi 0, %s162
      %s165 = sphi 0, %s164
      %s179 = sphi 0, %s165
      %s183 = sphi 0, %s183
      %s185 = sphi 0, %s183
      %s186 = sphi 0, %s185
      %s200 = sphi 0, %s186
      %s204 = sphi 0, %s204
      %s206 = sphi 0, %s204
      %s207 = sphi 0, %s206
      %s221 = sphi 0, %s207
      %s227 = sphi 0, %s229
      %s230 = sphi 0, %s227
      %s231 = sphi 0, %s230
      %s247 = sphi 0, %s231
    $region4: #{stem_block2_forward.1} parent=1 // loop_header_branch
      %21 = sbr.rel (%p19) target = $region8
    $region5: #{stem_block2_forward.1} parent=1 // loop_body
      %s23 = ssub.s32 %s18, 1
      %s24 = ssub.s32 %s18, 2
      %s25 = sadd.s32 %s18, 1
      %s26 = ssub.s32 %s18, %s25
      %p27 = scmp.eq.s32.totalorder %s26, 0
      %s29 = sadd.s32 %s28, 1
      %s30 = scalar_select %p27, %s28, %s29
      %p33 = pneg %p27
      %p34 = scmp.eq.s32.totalorder %s18, 7
      %p35 = por %p33, %p34
      %p36 = scmp.ne.s32.totalorder %s28, %s31
      %p37 = scmp.eq.s32.totalorder %s18, 0
      %p38 = por %p36, %p37
      %p39 = scmp.ne.s32.totalorder %s28, %s31
      %p40 = scmp.eq.s32.totalorder %s23, 7
      %p41 = por %p39, %p40
      %p42 = scmp.ne.s32.totalorder %s31, %s32
      %p43 = scmp.eq.s32.totalorder %s23, 0
      %p44 = por %p42, %p43
      %p45 = scmp.ne.s32.totalorder %s31, %s32
      %p46 = scmp.eq.s32.totalorder %s24, 7
      %p47 = por %p45, %p46
      %p49 = scmp.ne.s32.totalorder %s32, %s48
      %p50 = scmp.eq.s32.totalorder %s24, 0
      %p51 = por %p49, %p50
      %s52 = ssub.s32 %s18, %s25
      %p53 = scmp.eq.s32.totalorder %s52, 0
      %s55 = sadd.s32 %s54, 1
      %s56 = scalar_select %p53, %s54, %s55
      %p59 = pneg %p53
      %p60 = scmp.eq.s32.totalorder %s18, 7
      %p61 = por %p59, %p60
      %p62 = scmp.ne.s32.totalorder %s54, %s57
      %p63 = scmp.eq.s32.totalorder %s18, 0
      %p64 = por %p62, %p63
      %p65 = scmp.ne.s32.totalorder %s54, %s57
      %p66 = scmp.eq.s32.totalorder %s23, 7
      %p67 = por %p65, %p66
      %p68 = scmp.ne.s32.totalorder %s57, %s58
      %p69 = scmp.eq.s32.totalorder %s23, 0
      %p70 = por %p68, %p69
      %p71 = scmp.ne.s32.totalorder %s57, %s58
      %p72 = scmp.eq.s32.totalorder %s24, 7
      %p73 = por %p71, %p72
      %p75 = scmp.ne.s32.totalorder %s58, %s74
      %p76 = scmp.eq.s32.totalorder %s24, 0
      %p77 = por %p75, %p76
      %s79 = sadd.s32 %s78, 1
      %p82 = scmp.eq.s32.totalorder %s18, 7
      %p83 = scmp.ne.s32.totalorder %s78, %s80
      %p84 = scmp.eq.s32.totalorder %s18, 0
      %p85 = por %p83, %p84
      %p86 = scmp.ne.s32.totalorder %s78, %s80
      %p87 = scmp.eq.s32.totalorder %s23, 7
      %p88 = por %p86, %p87
      %p89 = scmp.ne.s32.totalorder %s80, %s81
      %p90 = scmp.eq.s32.totalorder %s23, 0
      %p91 = por %p89, %p90
      %p92 = scmp.ne.s32.totalorder %s80, %s81
      %p93 = scmp.eq.s32.totalorder %s24, 7
      %p94 = por %p92, %p93
      %p96 = scmp.ne.s32.totalorder %s81, %s95
      %p97 = scmp.eq.s32.totalorder %s24, 0
      %p98 = por %p96, %p97
      %s100 = sadd.s32 %s99, 1
      %p103 = scmp.eq.s32.totalorder %s18, 7
      %p104 = scmp.ne.s32.totalorder %s99, %s101
      %p105 = scmp.eq.s32.totalorder %s18, 0
      %p106 = por %p104, %p105
      %p107 = scmp.ne.s32.totalorder %s99, %s101
      %p108 = scmp.eq.s32.totalorder %s23, 7
      %p109 = por %p107, %p108
      %p110 = scmp.ne.s32.totalorder %s101, %s102
      %p111 = scmp.eq.s32.totalorder %s23, 0
      %p112 = por %p110, %p111
      %p113 = scmp.ne.s32.totalorder %s101, %s102
      %p114 = scmp.eq.s32.totalorder %s24, 7
      %p115 = por %p113, %p114
      %p117 = scmp.ne.s32.totalorder %s102, %s116
      %p118 = scmp.eq.s32.totalorder %s24, 0
      %p119 = por %p117, %p118
      %s121 = sadd.s32 %s120, 1
      %p124 = scmp.eq.s32.totalorder %s18, 7
      %p125 = scmp.ne.s32.totalorder %s120, %s122
      %p126 = scmp.eq.s32.totalorder %s18, 0
      %p127 = por %p125, %p126
      %p128 = scmp.ne.s32.totalorder %s120, %s122
      %p129 = scmp.eq.s32.totalorder %s23, 7
      %p130 = por %p128, %p129
      %p131 = scmp.ne.s32.totalorder %s122, %s123
      %p132 = scmp.eq.s32.totalorder %s23, 0
      %p133 = por %p131, %p132
      %p134 = scmp.ne.s32.totalorder %s122, %s123
      %p135 = scmp.eq.s32.totalorder %s24, 7
      %p136 = por %p134, %p135
      %p138 = scmp.ne.s32.totalorder %s123, %s137
      %p139 = scmp.eq.s32.totalorder %s24, 0
      %p140 = por %p138, %p139
      %s142 = sadd.s32 %s141, 1
      %p145 = scmp.eq.s32.totalorder %s18, 7
      %p146 = scmp.ne.s32.totalorder %s141, %s143
      %p147 = scmp.eq.s32.totalorder %s18, 0
      %p148 = por %p146, %p147
      %p149 = scmp.ne.s32.totalorder %s141, %s143
      %p150 = scmp.eq.s32.totalorder %s23, 7
      %p151 = por %p149, %p150
      %p152 = scmp.ne.s32.totalorder %s143, %s144
      %p153 = scmp.eq.s32.totalorder %s23, 0
      %p154 = por %p152, %p153
      %p155 = scmp.ne.s32.totalorder %s143, %s144
      %p156 = scmp.eq.s32.totalorder %s24, 7
      %p157 = por %p155, %p156
      %p159 = scmp.ne.s32.totalorder %s144, %s158
      %p160 = scmp.eq.s32.totalorder %s24, 0
      %p161 = por %p159, %p160
      %s163 = sadd.s32 %s162, 1
      %p166 = scmp.eq.s32.totalorder %s18, 7
      %p167 = scmp.ne.s32.totalorder %s162, %s164
      %p168 = scmp.eq.s32.totalorder %s18, 0
      %p169 = por %p167, %p168
      %p170 = scmp.ne.s32.totalorder %s162, %s164
      %p171 = scmp.eq.s32.totalorder %s23, 7
      %p172 = por %p170, %p171
      %p173 = scmp.ne.s32.totalorder %s164, %s165
      %p174 = scmp.eq.s32.totalorder %s23, 0
      %p175 = por %p173, %p174
      %p176 = scmp.ne.s32.totalorder %s164, %s165
      %p177 = scmp.eq.s32.totalorder %s24, 7
      %p178 = por %p176, %p177
      %p180 = scmp.ne.s32.totalorder %s165, %s179
      %p181 = scmp.eq.s32.totalorder %s24, 0
      %p182 = por %p180, %p181
      %s184 = sadd.s32 %s183, 1
      %p187 = scmp.eq.s32.totalorder %s18, 7
      %p188 = scmp.ne.s32.totalorder %s183, %s185
      %p189 = scmp.eq.s32.totalorder %s18, 0
      %p190 = por %p188, %p189
      %p191 = scmp.ne.s32.totalorder %s183, %s185
      %p192 = scmp.eq.s32.totalorder %s23, 7
      %p193 = por %p191, %p192
      %p194 = scmp.ne.s32.totalorder %s185, %s186
      %p195 = scmp.eq.s32.totalorder %s23, 0
      %p196 = por %p194, %p195
      %p197 = scmp.ne.s32.totalorder %s185, %s186
      %p198 = scmp.eq.s32.totalorder %s24, 7
      %p199 = por %p197, %p198
      %p201 = scmp.ne.s32.totalorder %s186, %s200
      %p202 = scmp.eq.s32.totalorder %s24, 0
      %p203 = por %p201, %p202
      %s205 = sadd.s32 %s204, 1
      %p208 = scmp.eq.s32.totalorder %s18, 7
      %p209 = scmp.ne.s32.totalorder %s204, %s206
      %p210 = scmp.eq.s32.totalorder %s18, 0
      %p211 = por %p209, %p210
      %p212 = scmp.ne.s32.totalorder %s204, %s206
      %p213 = scmp.eq.s32.totalorder %s23, 7
      %p214 = por %p212, %p213
      %p215 = scmp.ne.s32.totalorder %s206, %s207
      %p216 = scmp.eq.s32.totalorder %s23, 0
      %p217 = por %p215, %p216
      %p218 = scmp.ne.s32.totalorder %s206, %s207
      %p219 = scmp.eq.s32.totalorder %s24, 7
      %p220 = por %p218, %p219
      %p222 = scmp.ne.s32.totalorder %s207, %s221
      %p223 = scmp.eq.s32.totalorder %s24, 0
      %p224 = por %p222, %p223
      %s225 = ssub.s32 %s18, %s25
      %p226 = scmp.eq.s32.totalorder %s225, 0
      %s228 = sadd.s32 %s227, 1
      %s229 = scalar_select %p226, %s227, %s228
      %p232 = pneg %p226
      %p233 = scmp.eq.s32.totalorder %s18, 7
      %p234 = por %p232, %p233
      %p235 = scmp.ne.s32.totalorder %s227, %s230
      %p236 = scmp.eq.s32.totalorder %s18, 0
      %p237 = por %p235, %p236
      %p238 = scmp.ne.s32.totalorder %s227, %s230
      %p239 = scmp.eq.s32.totalorder %s23, 7
      %p240 = por %p238, %p239
      %p241 = scmp.ne.s32.totalorder %s230, %s231
      %p242 = scmp.eq.s32.totalorder %s23, 0
      %p243 = por %p241, %p242
      %p244 = scmp.ne.s32.totalorder %s230, %s231
      %p245 = scmp.eq.s32.totalorder %s24, 7
      %p246 = por %p244, %p245
      %p248 = scmp.ne.s32.totalorder %s231, %s247
      %p249 = scmp.eq.s32.totalorder %s24, 0
      %p250 = por %p248, %p249
      %p251 = scmp.le.s32.totalorder 1, %s18
      %p252 = scmp.lt.s32.totalorder %s18, 9
      %p253 = pnand %p251, %p252
      %p254 = pneg %p253
      // Predicated region
      $region9: #{stem_block2_forward.1} parent=5 // pred_check
        _
      $region10: #{stem_block2_forward.1} parent=5 // pred_check_branch
        %256 = sbr.rel (%p253) target = $region12
      $region11: #{stem_block2_forward.1} parent=5 // pred_region
        %s257 = ssub.s32 %s18, 1
        // Predicated region
        $region13: #{stem_block2_forward.1} parent=11 // pred_check
          %p258 = pneg %p91
        $region14: #{stem_block2_forward.1} parent=11 // pred_check_branch
          %260 = sbr.rel (%p258) target = $region16
        $region15: #{stem_block2_forward.1} parent=11 // pred_region
          _
        $region16: #{stem_block2_forward.1} parent=11 // pred_fallthru
          _
        // Predicated region
        $region17: #{stem_block2_forward.1} parent=11 // pred_check
          %p261 = pneg %p112
        $region18: #{stem_block2_forward.1} parent=11 // pred_check_branch
          %263 = sbr.rel (%p261) target = $region20
        $region19: #{stem_block2_forward.1} parent=11 // pred_region
          _
        $region20: #{stem_block2_forward.1} parent=11 // pred_fallthru
          _
        // Predicated region
        $region21: #{stem_block2_forward.1} parent=11 // pred_check
          %p264 = pneg %p133
        $region22: #{stem_block2_forward.1} parent=11 // pred_check_branch
          %266 = sbr.rel (%p264) target = $region24
        $region23: #{stem_block2_forward.1} parent=11 // pred_region
          _
        $region24: #{stem_block2_forward.1} parent=11 // pred_fallthru
          _
        // Predicated region
        $region25: #{stem_block2_forward.1} parent=11 // pred_check
          %p267 = pneg %p154
        $region26: #{stem_block2_forward.1} parent=11 // pred_check_branch
          %269 = sbr.rel (%p267) target = $region28
        $region27: #{stem_block2_forward.1} parent=11 // pred_region
          _
        $region28: #{stem_block2_forward.1} parent=11 // pred_fallthru
          _
        // Predicated region
        $region29: #{stem_block2_forward.1} parent=11 // pred_check
          %p270 = pneg %p175
        $region30: #{stem_block2_forward.1} parent=11 // pred_check_branch
          %272 = sbr.rel (%p270) target = $region32
        $region31: #{stem_block2_forward.1} parent=11 // pred_region
          _
        $region32: #{stem_block2_forward.1} parent=11 // pred_fallthru
          _
        // Predicated region
        $region33: #{stem_block2_forward.1} parent=11 // pred_check
          %p273 = pneg %p196
        $region34: #{stem_block2_forward.1} parent=11 // pred_check_branch
          %275 = sbr.rel (%p273) target = $region36
        $region35: #{stem_block2_forward.1} parent=11 // pred_region
          _
        $region36: #{stem_block2_forward.1} parent=11 // pred_fallthru
          _
        // Predicated region
        $region37: #{stem_block2_forward.1} parent=11 // pred_check
          %p276 = pneg %p217
        $region38: #{stem_block2_forward.1} parent=11 // pred_check_branch
          %278 = sbr.rel (%p276) target = $region40
        $region39: #{stem_block2_forward.1} parent=11 // pred_region
          _
        $region40: #{stem_block2_forward.1} parent=11 // pred_fallthru
          _
      $region12: #{stem_block2_forward.1} parent=5 // pred_fallthru
        _
      %p279 = scmp.lt.s32.totalorder %s18, 8
      // Predicated region
      $region41: #{stem_block2_forward.1} parent=5 // pred_check
        %p280 = pneg %p279
      $region42: #{stem_block2_forward.1} parent=5 // pred_check_branch
        %282 = sbr.rel (%p280) target = $region44
      $region43: #{stem_block2_forward.1} parent=5 // pred_region
        // Predicated region
        $region45: #{stem_block2_forward.1} parent=43 // pred_check
          %p283 = pneg %p38
        $region46: #{stem_block2_forward.1} parent=43 // pred_check_branch
          %285 = sbr.rel (%p283) target = $region48
        $region47: #{stem_block2_forward.1} parent=43 // pred_region
          %s286 = smul.u32 2, %s18
          %p287 = scmp.lt.s32.totalorder %s286, 15
          %s288 = scalar_select %p287, %s286, 15
          %s289 = smul.addr %s288, 8
          %s290 = scalar_lea.vmem %s0, %s289
          %s291 = smul.u32 2, %s18
        $region48: #{stem_block2_forward.1} parent=43 // pred_fallthru
          _
        // Predicated region
        $region49: #{stem_block2_forward.1} parent=43 // pred_check
          %p292 = pneg %p64
        $region50: #{stem_block2_forward.1} parent=43 // pred_check_branch
          %294 = sbr.rel (%p292) target = $region52
        $region51: #{stem_block2_forward.1} parent=43 // pred_region
          %s295 = smul.u32 2, %s18
          %p296 = scmp.lt.s32.totalorder %s295, 15
          %s297 = scalar_select %p296, %s295, 15
          %s298 = smul.addr %s297, 8
          %s299 = scalar_lea.vmem %s1, %s298
          %s300 = smul.u32 2, %s18
        $region52: #{stem_block2_forward.1} parent=43 // pred_fallthru
          _
      $region44: #{stem_block2_forward.1} parent=5 // pred_fallthru
        _
      %p301 = scmp.le.s32.totalorder 1, %s18
      %p302 = scmp.lt.s32.totalorder %s18, 9
      %p303 = pnand %p301, %p302
      %p304 = pneg %p303
      // Predicated region
      $region53: #{stem_block2_forward.1} parent=5 // pred_check
        _
      $region54: #{stem_block2_forward.1} parent=5 // pred_check_branch
        %306 = sbr.rel (%p303) target = $region56
      $region55: #{stem_block2_forward.1} parent=5 // pred_region
        %s307 = ssub.s32 %s18, 1
        %s308 = smul.u32 2, %s23
        %p309 = scmp.lt.s32.totalorder %s308, 15
        %s310 = scalar_select %p309, %s308, 15
        %s311 = smul.addr %s310, 8
        %s312 = scalar_lea.vmem %s0, %s311
        %p313 = pneg %p44
        %p314 = pneg %p41
        %s315 = smul.u32 2, %s23
        %p316 = scmp.lt.s32.totalorder %s315, 15
        %s317 = scalar_select %p316, %s315, 15
        %s318 = smul.addr %s317, 8
        %s319 = scalar_lea.vmem %s1, %s318
        %p320 = pneg %p70
        %p321 = pneg %p67
        %p322 = pneg %p91
        %p323 = pneg %p88
        %p324 = pneg %p112
        %p325 = pneg %p109
        %p326 = pneg %p133
        %p327 = pneg %p130
        %p328 = pneg %p154
        %p329 = pneg %p151
        %p330 = pneg %p175
        %p331 = pneg %p172
        %p332 = pneg %p196
        %p333 = pneg %p193
        %p334 = pneg %p217
        %p335 = pneg %p214
        %p336 = pneg %p243
        %p337 = pneg %p240
        %s338 = sand.u32 %s230, 1
        %s339 = scalar_lea.sflag [#allocation3], %s338
        %s340 = sand.u32 %s230, 1
        %s341 = smul.addr %s340, 16
        %s342 = scalar_lea.vmem [#allocation2], %s341
        %s343 = smul.u32 2, %s23
        %p344 = scmp.lt.s32.totalorder %s343, 15
        %s345 = scalar_select %p344, %s343, 15
        %s346 = smul.addr %s345, 8
        %s347 = scalar_lea.vmem %s0, %s346
        %s348 = smul.u32 2, %s23
        %s349 = smul.u32 2, %s23
        %p350 = scmp.lt.s32.totalorder %s349, 15
        %s351 = scalar_select %p350, %s349, 15
        %s352 = smul.addr %s351, 8
        %s353 = scalar_lea.vmem %s1, %s352
        %s354 = smul.u32 2, %s23
        %s355 = smul.u32 2, %s23
        %v356 = vld [vmem:[%s347] sm:$0xff]
        %v357 = vld [vmem:[%s347 + $0x8] sm:$0xff]
        %v358 = vld [vmem:[%s2] sm:$0xff]
        %v359 = vld [vmem:[%s2 + $0x8] sm:$0xff]
        %v360 = vld [vmem:[%s2 + $0x10] sm:$0xff]
        %v361 = vld [vmem:[%s2 + $0x18] sm:$0xff]
        %v362 = vld [vmem:[%s2 + $0x20] sm:$0xff]
        %v363 = vld [vmem:[%s2 + $0x28] sm:$0xff]
        %v364 = vld [vmem:[%s2 + $0x30] sm:$0xff]
        %v365 = vld [vmem:[%s2 + $0x38] sm:$0xff]
        %v366 = vld [vmem:[%s2 + $0x40] sm:$0xff]
        %v367 = vld [vmem:[%s2 + $0x48] sm:$0xff]
        %v368 = vld [vmem:[%s2 + $0x50] sm:$0xff]
        %v369 = vld [vmem:[%s2 + $0x58] sm:$0xff]
        %v370 = vld [vmem:[%s2 + $0x60] sm:$0xf]
        %v371 = vld [vmem:[%s3] sm:$0x1]
        %v373 = vlaneseq
        %v374 = vshrl.u32 %v373, 7
        %v375 = vsub.s32 0, %v374
        %v376 = vrot.slane %v371, %v375
        %vm378 = vcmask 818176
        %v380 = vsel %vm378, %v356, 0
        %v383 = vsel %vm378, %v357, 0
        %vm385 = vcmask 1043456
        %v387 = vsel %vm385, %v370, 0
        %389 = vmatprep.subr.mxu0 0.0
        %390 = vmatpush1.msra.mxu0 %v358
        %391 = vmatprep.subr.mxu0 0.0
        %392 = vmatpush1.msra.mxu0 %v359
        %393 = vmatprep.subr.mxu0 0.0
        %394 = vmatpush1.msra.mxu0 %v360
        %395 = vmatprep.subr.mxu0 0.0
        %396 = vmatpush1.msra.mxu0 %v361
        %397 = vmatprep.subr.mxu0 0.0
        %398 = vmatpush1.msra.mxu0 %v362
        %399 = vmatprep.subr.mxu0 0.0
        %400 = vmatpush1.msra.mxu0 %v363
        %401 = vmatprep.subr.mxu0 0.0
        %402 = vmatpush1.msra.mxu0 %v364
        %403 = vmatprep.subr.mxu0 0.0
        %404 = vmatpush1.msra.mxu0 %v365
        %405 = vmatprep.subr.mxu0 0.0
        %406 = vmatpush1.msra.mxu0 %v366
        %407 = vmatprep.subr.mxu0 0.0
        %408 = vmatpush1.msra.mxu0 %v367
        %409 = vmatprep.subr.mxu0 0.0
        %410 = vmatpush1.msra.mxu0 %v368
        %411 = vmatprep.subr.mxu0 0.0
        %412 = vmatpush1.msra.mxu0 %v369
        %413 = vmatprep.subr.mxu0 0.0
        %414 = vmatpush1.msra.mxu0 %v387
        %415 = vmatprep.subr.mxu0 0.0
        %416 = vmatpush1.msra.mxu0 0.0
        %417 = vmatprep.subr.mxu0 0.0
        %418 = vmatpush1.msra.mxu0 0.0
        %419 = vmatprep.subr.mxu0 0.0
        %420 = vmatpush1.msra.mxu0 0.0
        %421 = vmatprep.subr.mxu0 0.0
        %422 = vmatpush1.msra.mxu0 0.0
        %423 = vmatprep.subr.mxu0 0.0
        %424 = vmatpush1.msra.mxu0 0.0
        %425 = vmatprep.subr.mxu0 0.0
        %426 = vmatpush1.msra.mxu0 0.0
        %427 = vmatprep.subr.mxu0 0.0
        %428 = vmatpush1.msra.mxu0 0.0
        %429 = vmatprep.subr.mxu0 0.0
        %430 = vmatpush1.msra.mxu0 0.0
        %431 = vmatprep.subr.mxu0 0.0
        %432 = vmatpush1.msra.mxu0 0.0
        %433 = vmatprep.subr.mxu0 0.0
        %434 = vmatpush1.msra.mxu0 0.0
        %435 = vmatprep.subr.mxu0 0.0
        %436 = vmatpush1.msra.mxu0 0.0
        %437 = vmatprep.subr.mxu0 0.0
        %438 = vmatpush1.msra.mxu0 0.0
        %439 = vmatprep.subr.mxu0 0.0
        %440 = vmatpush1.msra.mxu0 0.0
        %441 = vmatprep.subr.mxu0 0.0
        %442 = vmatpush1.msra.mxu0 0.0
        %443 = vmatprep.subr.mxu0 0.0
        %444 = vmatpush1.msra.mxu0 0.0
        %445 = vmatprep.subr.mxu0 0.0
        %446 = vmatpush1.msra.mxu0 0.0
        %447 = vmatprep.subr.mxu0 0.0
        %448 = vmatpush1.msra.mxu0 0.0
        %449 = vmatprep.subr.mxu0 0.0
        %450 = vmatpush1.msra.mxu0 0.0
        %451 = vmatprep.subr.mxu0 0.0
        %452 = vmatpush1.msra.mxu0 0.0
        %453 = vmatprep.mubr.f32.mxu0 0.0
        %454 = vmatmul.mubr.f32.gmra.mrb[0].mxu0 %v380
        %v455 = vpop.f32.mrb[0].mxu0
        %v456 = vadd.f32 %v376, %v455
        %v457 = vpop.f32.mrb[0].mxu0
        %458 = vmatprep.mubr.f32.mxu0 0.0
        %459 = vmatmul.mubr.f32.gmra.mrb[0].mxu0 %v383
        %v460 = vpop.f32.mrb[0].mxu0
        %v461 = vadd.f32 %v376, %v460
        %v462 = vpop.f32.mrb[0].mxu0
        %463 = vdwg.mxu0
        %v464 = vmax.f32 %v456, 0.0
        %v465 = vmax.f32 %v461, 0.0
        %v466 = vld [vmem:[%s353] sm:$0xff]
        %v467 = vld [vmem:[%s353 + $0x8] sm:$0xff]
        %469 = vset.pattern.permute.xlu0 0
        %470 = vperm.xlu0 %469, %v466
        %v471 = vpop.permute.xlu0 %470
        %474 = vset.pattern.permute.xlu0 0
        %475 = vperm.xlu0 %474, %v467
        %v476 = vpop.permute.xlu0 %475
        %v478 = vadd.f32 %v356, %v471
        %v479 = vadd.f32 %v357, %v476
        %480 = vset.pattern.permute.xlu0 1
        %481 = vperm.xlu0 %480, %v466
        %v482 = vpop.permute.xlu0 %481
        %484 = vset.pattern.permute.xlu0 1
        %485 = vperm.xlu0 %484, %v467
        %v486 = vpop.permute.xlu0 %485
        %v488 = vadd.f32 %v356, %v482
        %v489 = vadd.f32 %v357, %v486
        %492 = vrot.lane.b32.xlu0 %v488, 124
        %v493 = vpop.permute.xlu0 %492
        %494 = vrot.lane.b32.xlu0 %v489, 124
        %v495 = vpop.permute.xlu0 %494
        %v498 = vmax.f32 %v478, %v493
        %v499 = vmax.f32 %v479, %v495
        %500 = vset.pattern.permute.xlu0 2
        %501 = vperm.xlu0 %500, %v466
        %v502 = vpop.permute.xlu0 %501
        %504 = vset.pattern.permute.xlu0 2
        %505 = vperm.xlu0 %504, %v467
        %v506 = vpop.permute.xlu0 %505
        %v508 = vadd.f32 %v356, %v502
        %v509 = vadd.f32 %v357, %v506
        %512 = vrot.lane.b32.xlu0 %v508, 120
        %v513 = vpop.permute.xlu0 %512
        %514 = vrot.lane.b32.xlu0 %v509, 120
        %v515 = vpop.permute.xlu0 %514
        %v518 = vmax.f32 %v498, %v513
        %v519 = vmax.f32 %v499, %v515
        %520 = vset.pattern.permute.xlu0 3
        %521 = vperm.xlu0 %520, %v466
        %v522 = vpop.permute.xlu0 %521
        %524 = vset.pattern.permute.xlu0 3
        %525 = vperm.xlu0 %524, %v467
        %v526 = vpop.permute.xlu0 %525
        %v528 = vadd.f32 %v356, %v522
        %v529 = vadd.f32 %v357, %v526
        %532 = vrot.lane.b32.xlu0 %v528, 108
        %v533 = vpop.permute.xlu0 %532
        %534 = vrot.lane.b32.xlu0 %v529, 108
        %v535 = vpop.permute.xlu0 %534
        %v538 = vmax.f32 %v518, %v533
        %v539 = vmax.f32 %v519, %v535
        %540 = vset.pattern.permute.xlu0 4
        %541 = vperm.xlu0 %540, %v466
        %v542 = vpop.permute.xlu0 %541
        %544 = vset.pattern.permute.xlu0 4
        %545 = vperm.xlu0 %544, %v467
        %v546 = vpop.permute.xlu0 %545
        %v548 = vadd.f32 %v356, %v542
        %v549 = vadd.f32 %v357, %v546
        %552 = vrot.lane.b32.xlu0 %v548, 104
        %v553 = vpop.permute.xlu0 %552
        %554 = vrot.lane.b32.xlu0 %v549, 104
        %v555 = vpop.permute.xlu0 %554
        %v558 = vmax.f32 %v538, %v553
        %v559 = vmax.f32 %v539, %v555
        %560 = vset.pattern.permute.xlu0 5
        %561 = vperm.xlu0 %560, %v466
        %v562 = vpop.permute.xlu0 %561
        %564 = vset.pattern.permute.xlu0 5
        %565 = vperm.xlu0 %564, %v467
        %v566 = vpop.permute.xlu0 %565
        %v568 = vadd.f32 %v356, %v562
        %v569 = vadd.f32 %v357, %v566
        %572 = vrot.lane.b32.xlu0 %v568, 100
        %v573 = vpop.permute.xlu0 %572
        %574 = vrot.lane.b32.xlu0 %v569, 100
        %v575 = vpop.permute.xlu0 %574
        %v578 = vmax.f32 %v558, %v573
        %v579 = vmax.f32 %v559, %v575
        %580 = vset.pattern.permute.xlu0 6
        %581 = vperm.xlu0 %580, %v466
        %v582 = vpop.permute.xlu0 %581
        %584 = vset.pattern.permute.xlu0 6
        %585 = vperm.xlu0 %584, %v467
        %v586 = vpop.permute.xlu0 %585
        %v588 = vadd.f32 %v356, %v582
        %v589 = vadd.f32 %v357, %v586
        %592 = vrot.lane.b32.xlu0 %v588, 88
        %v593 = vpop.permute.xlu0 %592
        %594 = vrot.lane.b32.xlu0 %v589, 88
        %v595 = vpop.permute.xlu0 %594
        %v598 = vmax.f32 %v578, %v593
        %v599 = vmax.f32 %v579, %v595
        %600 = vset.pattern.permute.xlu0 7
        %601 = vperm.xlu0 %600, %v466
        %v602 = vpop.permute.xlu0 %601
        %604 = vset.pattern.permute.xlu0 7
        %605 = vperm.xlu0 %604, %v467
        %v606 = vpop.permute.xlu0 %605
        %v608 = vadd.f32 %v356, %v602
        %v609 = vadd.f32 %v357, %v606
        %612 = vrot.lane.b32.xlu0 %v608, 84
        %v613 = vpop.permute.xlu0 %612
        %614 = vrot.lane.b32.xlu0 %v609, 84
        %v615 = vpop.permute.xlu0 %614
        %v618 = vmax.f32 %v598, %v613
        %v619 = vmax.f32 %v599, %v615
        %620 = vset.pattern.permute.xlu0 8
        %621 = vperm.xlu0 %620, %v466
        %v622 = vpop.permute.xlu0 %621
        %624 = vset.pattern.permute.xlu0 8
        %625 = vperm.xlu0 %624, %v467
        %v626 = vpop.permute.xlu0 %625
        %v628 = vadd.f32 %v356, %v622
        %v629 = vadd.f32 %v357, %v626
        %632 = vrot.lane.b32.xlu0 %v628, 80
        %v633 = vpop.permute.xlu0 %632
        %634 = vrot.lane.b32.xlu0 %v629, 80
        %v635 = vpop.permute.xlu0 %634
        %v638 = vmax.f32 %v618, %v633
        %v639 = vmax.f32 %v619, %v635
        %v640 = vld [vmem:[%s4] sm:$0xf]
        %v641 = vld [vmem:[%s5] sm:$0x1]
        %v643 = vlaneseq
        %v644 = vshrl.u32 %v643, 7
        %v645 = vsub.s32 0, %v644
        %v646 = vrot.slane %v641, %v645
        %650 = vrot.lane.b32.xlu0 %v638, 104
        %v651 = vpop.permute.xlu0 %650
        %652 = vrot.lane.b32.xlu0 %v639, 104
        %v653 = vpop.permute.xlu0 %652
        %vm654 = vcmask 31744
        %v655 = vsel %vm654, %v651, 0
        %v657 = vsel %vm654, %v653, 0
        %v660 = vsel %vm385, %v640, 0
        %662 = vmatprep.subr.mxu0 0.0
        %663 = vmatpush1.msra.mxu0 %v660
        %664 = vmatprep.subr.mxu0 0.0
        %665 = vmatpush1.msra.mxu0 0.0
        %666 = vmatprep.subr.mxu0 0.0
        %667 = vmatpush1.msra.mxu0 0.0
        %668 = vmatprep.subr.mxu0 0.0
        %669 = vmatpush1.msra.mxu0 0.0
        %670 = vmatprep.subr.mxu0 0.0
        %671 = vmatpush1.msra.mxu0 0.0
        %672 = vmatprep.subr.mxu0 0.0
        %673 = vmatpush1.msra.mxu0 0.0
        %674 = vmatprep.subr.mxu0 0.0
        %675 = vmatpush1.msra.mxu0 0.0
        %676 = vmatprep.subr.mxu0 0.0
        %677 = vmatpush1.msra.mxu0 0.0
        %678 = vmatprep.subr.mxu0 0.0
        %679 = vmatpush1.msra.mxu0 0.0
        %680 = vmatprep.subr.mxu0 0.0
        %681 = vmatpush1.msra.mxu0 0.0
        %682 = vmatprep.subr.mxu0 0.0
        %683 = vmatpush1.msra.mxu0 0.0
        %684 = vmatprep.subr.mxu0 0.0
        %685 = vmatpush1.msra.mxu0 0.0
        %686 = vmatprep.subr.mxu0 0.0
        %687 = vmatpush1.msra.mxu0 0.0
        %688 = vmatprep.subr.mxu0 0.0
        %689 = vmatpush1.msra.mxu0 0.0
        %690 = vmatprep.subr.mxu0 0.0
        %691 = vmatpush1.msra.mxu0 0.0
        %692 = vmatprep.subr.mxu0 0.0
        %693 = vmatpush1.msra.mxu0 0.0
        %694 = vmatprep.subr.mxu0 0.0
        %695 = vmatpush1.msra.mxu0 0.0
        %696 = vmatprep.subr.mxu0 0.0
        %697 = vmatpush1.msra.mxu0 0.0
        %698 = vmatprep.subr.mxu0 0.0
        %699 = vmatpush1.msra.mxu0 0.0
        %700 = vmatprep.subr.mxu0 0.0
        %701 = vmatpush1.msra.mxu0 0.0
        %702 = vmatprep.subr.mxu0 0.0
        %703 = vmatpush1.msra.mxu0 0.0
        %704 = vmatprep.subr.mxu0 0.0
        %705 = vmatpush1.msra.mxu0 0.0
        %706 = vmatprep.subr.mxu0 0.0
        %707 = vmatpush1.msra.mxu0 0.0
        %708 = vmatprep.subr.mxu0 0.0
        %709 = vmatpush1.msra.mxu0 0.0
        %710 = vmatprep.subr.mxu0 0.0
        %711 = vmatpush1.msra.mxu0 0.0
        %712 = vmatprep.subr.mxu0 0.0
        %713 = vmatpush1.msra.mxu0 0.0
        %714 = vmatprep.subr.mxu0 0.0
        %715 = vmatpush1.msra.mxu0 0.0
        %716 = vmatprep.subr.mxu0 0.0
        %717 = vmatpush1.msra.mxu0 0.0
        %718 = vmatprep.subr.mxu0 0.0
        %719 = vmatpush1.msra.mxu0 0.0
        %720 = vmatprep.subr.mxu0 0.0
        %721 = vmatpush1.msra.mxu0 0.0
        %722 = vmatprep.subr.mxu0 0.0
        %723 = vmatpush1.msra.mxu0 0.0
        %724 = vmatprep.subr.mxu0 0.0
        %725 = vmatpush1.msra.mxu0 0.0
        %726 = vmatprep.mubr.f32.mxu0 0.0
        %727 = vmatmul.mubr.f32.gmra.mrb[0].mxu0 %v655
        %v728 = vpop.f32.mrb[0].mxu0
        %v729 = vadd.f32 %v646, %v728
        %v730 = vpop.f32.mrb[0].mxu0
        %731 = vmatprep.mubr.f32.mxu0 0.0
        %732 = vmatmul.mubr.f32.gmra.mrb[0].mxu0 %v657
        %v733 = vpop.f32.mrb[0].mxu0
        %v734 = vadd.f32 %v646, %v733
        %v735 = vpop.f32.mrb[0].mxu0
        %736 = vdwg.mxu0
        %739 = vrot.lane.b32.xlu0 %v456, 104
        %v740 = vpop.permute.xlu0 %739
        %741 = vrot.lane.b32.xlu0 %v461, 104
        %v742 = vpop.permute.xlu0 %741
        %v745 = vadd.f32 %v729, %v740
        %v746 = vadd.f32 %v734, %v742
        %v747 = vmax.f32 %v745, 0.0
        %v748 = vmax.f32 %v746, 0.0
        %v749 = vld [vmem:[%s6] sm:$0xff]
        %v750 = vld [vmem:[%s6 + $0x8] sm:$0xff]
        %v751 = vld [vmem:[%s6 + $0x10] sm:$0xff]
        %v752 = vld [vmem:[%s7] sm:$0xff]
        %vm753 = vcmask 64512
        %v755 = vsel %vm753, %v747, 0
        %v758 = vsel %vm753, %v748, 0
        %760 = vmatprep.subr.mxu0 0.0
        %761 = vmatpush1.msra.mxu0 %v752
        %762 = vmatprep.subr.mxu0 0.0
        %763 = vmatpush1.msra.mxu0 0.0
        %764 = vmatprep.subr.mxu0 0.0
        %765 = vmatpush1.msra.mxu0 0.0
        %766 = vmatprep.subr.mxu0 0.0
        %767 = vmatpush1.msra.mxu0 0.0
        %768 = vmatprep.subr.mxu0 0.0
        %769 = vmatpush1.msra.mxu0 0.0
        %770 = vmatprep.subr.mxu0 0.0
        %771 = vmatpush1.msra.mxu0 0.0
        %772 = vmatprep.subr.mxu0 0.0
        %773 = vmatpush1.msra.mxu0 0.0
        %774 = vmatprep.subr.mxu0 0.0
        %775 = vmatpush1.msra.mxu0 0.0
        %776 = vmatprep.subr.mxu0 0.0
        %777 = vmatpush1.msra.mxu0 0.0
        %778 = vmatprep.subr.mxu0 0.0
        %779 = vmatpush1.msra.mxu0 0.0
        %780 = vmatprep.subr.mxu0 0.0
        %781 = vmatpush1.msra.mxu0 0.0
        %782 = vmatprep.subr.mxu0 0.0
        %783 = vmatpush1.msra.mxu0 0.0
        %784 = vmatprep.subr.mxu0 0.0
        %785 = vmatpush1.msra.mxu0 0.0
        %786 = vmatprep.subr.mxu0 0.0
        %787 = vmatpush1.msra.mxu0 0.0
        %788 = vmatprep.subr.mxu0 0.0
        %789 = vmatpush1.msra.mxu0 0.0
        %790 = vmatprep.subr.mxu0 0.0
        %791 = vmatpush1.msra.mxu0 0.0
        %792 = vmatprep.subr.mxu0 0.0
        %793 = vmatpush1.msra.mxu0 0.0
        %794 = vmatprep.subr.mxu0 0.0
        %795 = vmatpush1.msra.mxu0 0.0
        %796 = vmatprep.subr.mxu0 0.0
        %797 = vmatpush1.msra.mxu0 0.0
        %798 = vmatprep.subr.mxu0 0.0
        %799 = vmatpush1.msra.mxu0 0.0
        %800 = vmatprep.subr.mxu0 0.0
        %801 = vmatpush1.msra.mxu0 0.0
        %802 = vmatprep.subr.mxu0 0.0
        %803 = vmatpush1.msra.mxu0 0.0
        %804 = vmatprep.subr.mxu0 0.0
        %805 = vmatpush1.msra.mxu0 0.0
        %806 = vmatprep.subr.mxu0 0.0
        %807 = vmatpush1.msra.mxu0 0.0
        %808 = vmatprep.subr.mxu0 0.0
        %809 = vmatpush1.msra.mxu0 0.0
        %810 = vmatprep.subr.mxu0 0.0
        %811 = vmatpush1.msra.mxu0 0.0
        %812 = vmatprep.subr.mxu0 0.0
        %813 = vmatpush1.msra.mxu0 0.0
        %814 = vmatprep.subr.mxu0 0.0
        %815 = vmatpush1.msra.mxu0 0.0
        %816 = vmatprep.subr.mxu0 0.0
        %817 = vmatpush1.msra.mxu0 0.0
        %818 = vmatprep.subr.mxu0 0.0
        %819 = vmatpush1.msra.mxu0 0.0
        %820 = vmatprep.subr.mxu0 0.0
        %821 = vmatpush1.msra.mxu0 0.0
        %822 = vmatprep.subr.mxu0 0.0
        %823 = vmatpush1.msra.mxu0 0.0
        %824 = vmatprep.mubr.f32.mxu0 0.0
        %825 = vmatmul.mubr.f32.gmra.mrb[0].mxu0 %v755
        %v826 = vpop.f32.mrb[0].mxu0
        %v827 = vadd.f32 0.0, %v826
        %v828 = vpop.f32.mrb[0].mxu0
        %829 = vmatprep.mubr.f32.mxu0 0.0
        %830 = vmatmul.mubr.f32.gmra.mrb[0].mxu0 %v758
        %v831 = vpop.f32.mrb[0].mxu0
        %v832 = vadd.f32 0.0, %v831
        %v833 = vpop.f32.mrb[0].mxu0
        %834 = vdwg.mxu0
        %vm835 = vcmask 195584
        %v837 = vsel %vm835, %v464, 0
        %v840 = vsel %vm835, %v465, 0
        %842 = vmatprep.subr.mxu0 0.0
        %843 = vmatpush1.msra.mxu0 %v749
        %844 = vmatprep.subr.mxu0 0.0
        %845 = vmatpush1.msra.mxu0 %v750
        %846 = vmatprep.subr.mxu0 0.0
        %847 = vmatpush1.msra.mxu0 %v751
        %848 = vmatprep.subr.mxu0 0.0
        %849 = vmatpush1.msra.mxu0 0.0
        %850 = vmatprep.subr.mxu0 0.0
        %851 = vmatpush1.msra.mxu0 0.0
        %852 = vmatprep.subr.mxu0 0.0
        %853 = vmatpush1.msra.mxu0 0.0
        %854 = vmatprep.subr.mxu0 0.0
        %855 = vmatpush1.msra.mxu0 0.0
        %856 = vmatprep.subr.mxu0 0.0
        %857 = vmatpush1.msra.mxu0 0.0
        %858 = vmatprep.subr.mxu0 0.0
        %859 = vmatpush1.msra.mxu0 0.0
        %860 = vmatprep.subr.mxu0 0.0
        %861 = vmatpush1.msra.mxu0 0.0
        %862 = vmatprep.subr.mxu0 0.0
        %863 = vmatpush1.msra.mxu0 0.0
        %864 = vmatprep.subr.mxu0 0.0
        %865 = vmatpush1.msra.mxu0 0.0
        %866 = vmatprep.subr.mxu0 0.0
        %867 = vmatpush1.msra.mxu0 0.0
        %868 = vmatprep.subr.mxu0 0.0
        %869 = vmatpush1.msra.mxu0 0.0
        %870 = vmatprep.subr.mxu0 0.0
        %871 = vmatpush1.msra.mxu0 0.0
        %872 = vmatprep.subr.mxu0 0.0
        %873 = vmatpush1.msra.mxu0 0.0
        %874 = vmatprep.subr.mxu0 0.0
        %875 = vmatpush1.msra.mxu0 0.0
        %876 = vmatprep.subr.mxu0 0.0
        %877 = vmatpush1.msra.mxu0 0.0
        %878 = vmatprep.subr.mxu0 0.0
        %879 = vmatpush1.msra.mxu0 0.0
        %880 = vmatprep.subr.mxu0 0.0
        %881 = vmatpush1.msra.mxu0 0.0
        %882 = vmatprep.subr.mxu0 0.0
        %883 = vmatpush1.msra.mxu0 0.0
        %884 = vmatprep.subr.mxu0 0.0
        %885 = vmatpush1.msra.mxu0 0.0
        %886 = vmatprep.subr.mxu0 0.0
        %887 = vmatpush1.msra.mxu0 0.0
        %888 = vmatprep.subr.mxu0 0.0
        %889 = vmatpush1.msra.mxu0 0.0
        %890 = vmatprep.subr.mxu0 0.0
        %891 = vmatpush1.msra.mxu0 0.0
        %892 = vmatprep.subr.mxu0 0.0
        %893 = vmatpush1.msra.mxu0 0.0
        %894 = vmatprep.subr.mxu0 0.0
        %895 = vmatpush1.msra.mxu0 0.0
        %896 = vmatprep.subr.mxu0 0.0
        %897 = vmatpush1.msra.mxu0 0.0
        %898 = vmatprep.subr.mxu0 0.0
        %899 = vmatpush1.msra.mxu0 0.0
        %900 = vmatprep.subr.mxu0 0.0
        %901 = vmatpush1.msra.mxu0 0.0
        %902 = vmatprep.subr.mxu0 0.0
        %903 = vmatpush1.msra.mxu0 0.0
        %904 = vmatprep.subr.mxu0 0.0
        %905 = vmatpush1.msra.mxu0 0.0
        %906 = vmatprep.mubr.f32.mxu0 0.0
        %907 = vmatmul.mubr.f32.gmra.mrb[0].mxu0 %v837
        %v908 = vpop.f32.mrb[0].mxu0
        %v909 = vadd.f32 %v827, %v908
        %v910 = vpop.f32.mrb[0].mxu0
        %911 = vmatprep.mubr.f32.mxu0 0.0
        %912 = vmatmul.mubr.f32.gmra.mrb[0].mxu0 %v840
        %v913 = vpop.f32.mrb[0].mxu0
        %v914 = vadd.f32 %v832, %v913
        %v915 = vpop.f32.mrb[0].mxu0
        %916 = vdwg.mxu0
        %v917 = vld [vmem:[%s8] sm:$0x1]
        %v919 = vlaneseq
        %v920 = vshrl.u32 %v919, 7
        %v921 = vsub.s32 0, %v920
        %v922 = vrot.slane %v917, %v921
        %v924 = vadd.f32 %v909, %v922
        %v925 = vadd.f32 %v914, %v922
        %v926 = vmax.f32 %v924, 0.0
        %v927 = vmax.f32 %v925, 0.0
        %vm928 = vcmask 523264
        %929 = vst.msk [vmem:[%s342] sm:$0xff] %vm928, %v926
        %930 = vst.msk [vmem:[%s342 + $0x8] sm:$0xff] %vm928, %v927
        %s931 = sand.u32 %s230, 1
        %s932 = scalar_lea.sflag [#allocation3], %s931
        %s933 = sand.u32 %s230, 1
        %s934 = smul.addr %s933, 16
        %s935 = scalar_lea.vmem [#allocation2], %s934
        // Predicated region
        $region57: #{stem_block2_forward.1} parent=55 // pred_check
          %p936 = pneg %p240
        $region58: #{stem_block2_forward.1} parent=55 // pred_check_branch
          %938 = sbr.rel (%p936) target = $region60
        $region59: #{stem_block2_forward.1} parent=55 // pred_region
          %s939 = smul.u32 2, %s23
          %s941 = ssub.s32 256, 256
          %942 = vsyncadd %s932, %s941
          %s943 = smul.addr %s939, 128
          %s944 = scalar_lea.hbm %s9, %s943
          %s945 = sshll.u32 %s935, 4
          %s946 = int_to_ptr.vmem [resolvable:$true] %s945
          %951 = dma.vmem_to_hbm [thread:$0]  %s946, 256, %s944, %s932, 128, 128, 8
        $region60: #{stem_block2_forward.1} parent=55 // pred_fallthru
          _
      $region56: #{stem_block2_forward.1} parent=5 // pred_fallthru
        _
      %p952 = scmp.le.s32.totalorder 2, %s18
      // Predicated region
      $region61: #{stem_block2_forward.1} parent=5 // pred_check
        %p953 = pneg %p952
      $region62: #{stem_block2_forward.1} parent=5 // pred_check_branch
        %955 = sbr.rel (%p953) target = $region64
      $region63: #{stem_block2_forward.1} parent=5 // pred_region
        %s956 = ssub.s32 %s18, 2
        // Predicated region
        $region65: #{stem_block2_forward.1} parent=63 // pred_check
          %p957 = pneg %p246
        $region66: #{stem_block2_forward.1} parent=63 // pred_check_branch
          %959 = sbr.rel (%p957) target = $region68
        $region67: #{stem_block2_forward.1} parent=63 // pred_region
          %s960 = sand.u32 %s231, 1
          %s961 = scalar_lea.sflag [#allocation3], %s960
          %s962 = sand.u32 %s231, 1
          %s963 = smul.addr %s962, 16
          %s964 = scalar_lea.vmem [#allocation2], %s963
          %965 = dma.done %s961, 256
        $region68: #{stem_block2_forward.1} parent=63 // pred_fallthru
          _
      $region64: #{stem_block2_forward.1} parent=5 // pred_fallthru
        _
    $region6: #{stem_block2_forward.1} parent=1 // loop_footer
      %s22 = sadd.s32 1, %s18
    $region7: #{stem_block2_forward.1} parent=1 // loop_footer_branch
      %17 = sbr.rel target = $region3
    $region8: #{stem_block2_forward.1} parent=1 // loop_exit
      _
    %966 = vsyncpa [#allocation3], 1
    %s967 = scalar_lea.sflag [#allocation3], 1
    %968 = vsyncpa %s967, 1

</llo_original>
